<compile_context>
chip_gen: v7x
topology: tpu7x:2x2x1
jax: 0.10.0
libtpu: 0.0.40
codegen_flags: <defaults>
</compile_context>

<pallas_src>
import jax
import jax.numpy as jnp
from jax.experimental import pallas as pl
from jax.experimental.pallas import tpu as pltpu


def _cdiv(a, b):
    return (a + b - 1) // b


def _round_up(x, m):
    return ((x + m - 1) // m) * m


def mlp_kernel(x_ref, w1_ref, b1_ref, g_ref, b2_ref, o_ref):
    # x_ref : (TBP, PACK*D)   -- PACK samples packed side-by-side per row
    # w1_ref: (PACK*D, PACK*H) block-diagonal fc1 weight  (kron(I, W1))
    # b1_ref: (1, PACK*H)      tiled fc1 bias
    # g_ref : (PACK*H, PACK)   block-diagonal fc2 weight  (kron(I, w2))
    # b2_ref: SMEM (1,)        fc2 bias scalar
    # o_ref : (TBP, PACK)
    h = jnp.dot(x_ref[...], w1_ref[...], preferred_element_type=jnp.float32)  # MXU
    h = jnp.maximum(h + b1_ref[...], 0.0)                                     # VPU
    out = jnp.dot(h, g_ref[...], preferred_element_type=jnp.float32)          # MXU
    o_ref[...] = (out + b2_ref[0]).astype(o_ref.dtype)


def binary_text_classifier(x, w1, b1, w2, b2):
    """x: (B, D) f32; w1: (D, H); b1: (H,); w2: (H, 1); b2: (1,)."""
    B, D = x.shape
    H = w1.shape[1]
    assert w2.shape[0] == H and w2.shape[1] == 1, "fc2 must have a single output unit"

    # --- sample packing ------------------------------------------------------
    # PACK samples per 128-lane row (D=32 -> PACK=4 fills all contraction lanes).
    PACK = max(1, 128 // D) if D <= 128 else 1

    # --- batch tiling (packed rows) ------------------------------------------
    TBP_MAX = 2048   # packed rows / tile: 2048*128*4B = 1 MiB x-buffer
    MIN_TBP = 8      # sublane granularity

    rows = _cdiv(B, PACK)
    num_tiles = max(_cdiv(rows, TBP_MAX), 1)
    if num_tiles == 1 and rows > MIN_TBP:
        num_tiles = 2            # keep >=2 tiles so v7x's 2nd TensorCore has work
    tbp = _round_up(_cdiv(rows, num_tiles), MIN_TBP)
    rows_pad = tbp * num_tiles
    B_pad = rows_pad * PACK

    if B_pad != B:
        x = jnp.pad(x, ((0, B_pad - B), (0, 0)))
    x_packed = x.reshape(rows_pad, PACK * D)          # free row-major reshape

    # --- parameter plumbing (block-diagonal packing) --------------------------
    eye = jnp.eye(PACK, dtype=w1.dtype)
    w1_blk = jnp.kron(eye, w1)                        # (PACK*D, PACK*H)
    b1_row = jnp.tile(b1, PACK).reshape(1, PACK * H)  # (1, PACK*H)
    g_blk = jnp.kron(eye, w2)                         # (PACK*H, PACK)
    b2_s = b2.reshape(1).astype(jnp.float32)          # SMEM scalar

    cost = pl.CostEstimate(
        flops=2 * rows_pad * (PACK * D * PACK * H + PACK * H * PACK),
        transcendentals=0,
        bytes_accessed=4 * (rows_pad * PACK * D + rows_pad * PACK
                            + PACK * D * PACK * H + PACK * H
                            + PACK * H * PACK + 1),
    )

    out_packed = pl.pallas_call(
        mlp_kernel,
        out_shape=jax.ShapeDtypeStruct((rows_pad, PACK), x.dtype),
        grid_spec=pl.GridSpec(
            grid=(num_tiles,),
            in_specs=[
                pl.BlockSpec((tbp, PACK * D), lambda i: (i, 0)),      # x: streamed
                pl.BlockSpec((PACK * D, PACK * H), lambda i: (0, 0)), # W1_blk resident
                pl.BlockSpec((1, PACK * H), lambda i: (0, 0)),        # b1 resident
                pl.BlockSpec((PACK * H, PACK), lambda i: (0, 0)),     # G resident
                pl.BlockSpec(memory_space=pltpu.MemorySpace.SMEM),    # b2 scalar
            ],
            out_specs=pl.BlockSpec((tbp, PACK), lambda i: (i, 0)),
        ),
        compiler_params=pltpu.CompilerParams(
            dimension_semantics=("parallel",),   # independent batch tiles
        ),
        cost_estimate=cost,
    )(x_packed, w1_blk, b1_row, g_blk, b2_s)

    # (rows_pad, PACK) row-major == sample order -> (B_pad, 1), slice off padding.
    return out_packed.reshape(B_pad, 1)[:B]


def reference_forward(x, w1, b1, w2, b2):
    h = jnp.maximum(x @ w1 + b1, 0.0)
    return h @ w2 + b2


if __name__ == "__main__":
    D = 32   # input_size
    H = 16   # fc1 out features
    O = 1    # fc2 out features

    key = jax.random.PRNGKey(0)
    kx, kw1, kb1, kw2, kb2 = jax.random.split(key, 5)

    # Deterministic init mimicking PyTorch nn.Linear: U(-1/sqrt(fan_in), +1/sqrt(fan_in))
    lim1 = 1.0 / jnp.sqrt(jnp.float32(D))
    w1 = jax.random.uniform(kw1, (D, H), minval=-lim1, maxval=lim1, dtype=jnp.float32)
    b1 = jax.random.uniform(kb1, (H,), minval=-lim1, maxval=lim1, dtype=jnp.float32)

    lim2 = 1.0 / jnp.sqrt(jnp.float32(H))
    w2 = jax.random.uniform(kw2, (H, O), minval=-lim2, maxval=lim2, dtype=jnp.float32)
    b2 = jax.random.uniform(kb2, (O,), minval=-lim2, maxval=lim2, dtype=jnp.float32)

    # Check 1: small aligned batch.
    B = 8
    x = jax.random.normal(kx, (B, D), dtype=jnp.float32)
    out = jax.block_until_ready(binary_text_classifier(x, w1, b1, w2, b2))
    ref = reference_forward(x, w1, b1, w2, b2)
    assert out.shape == (B, O), out.shape
    assert jnp.allclose(out, ref, atol=1e-5, rtol=1e-5), (out, ref)

    # Check 2: batch not a multiple of PACK or 8 (exercises pad + pack + slice).
    B2 = 10
    x2 = jax.random.normal(jax.random.PRNGKey(1), (B2, D), dtype=jnp.float32)
    out2 = jax.block_until_ready(binary_text_classifier(x2, w1, b1, w2, b2))
    ref2 = reference_forward(x2, w1, b1, w2, b2)
    assert out2.shape == (B2, O), out2.shape
    assert jnp.allclose(out2, ref2, atol=1e-5, rtol=1e-5), (out2, ref2)

    print("KERNEL_OK")
</pallas_src>

<mosaic_0001>
module attributes {stable_mosaic.version = 11 : i64} {
  func.func @mlp_kernel(%arg0: i32, %arg1: memref<8x128xf32, #tpu.memory_space<vmem>>, %arg2: memref<128x64xf32, #tpu.memory_space<vmem>>, %arg3: memref<1x64xf32, #tpu.memory_space<vmem>>, %arg4: memref<64x4xf32, #tpu.memory_space<vmem>>, %arg5: memref<1xf32, #tpu.memory_space<smem>>, %arg6: memref<8x4xf32, #tpu.memory_space<vmem>>) attributes {dimension_semantics = [#tpu.dimension_semantics<parallel>], iteration_bounds = array<i64: 1>, scalar_prefetch = 0 : i64, scratch_operands = 0 : i64, tpu.core_type = #tpu.core_type<tc>, window_params = [{transform_indices = @transform_0, window_bounds = array<i64: 8, 128>}, {pipeline_mode = #tpu.pipeline_mode<synchronous>, transform_indices = @transform_1, window_bounds = array<i64: 128, 64>}, {pipeline_mode = #tpu.pipeline_mode<synchronous>, transform_indices = @transform_2, window_bounds = array<i64: 1, 64>}, {pipeline_mode = #tpu.pipeline_mode<synchronous>, transform_indices = @transform_3, window_bounds = array<i64: 64, 4>}, {transform_indices = @transform_4, window_bounds = array<i64: 1>}, {transform_indices = @transform_5, window_bounds = array<i64: 8, 4>}]} {
    %c0 = arith.constant 0 : index
    %c0_0 = arith.constant 0 : index
    %0 = vector.load %arg1[%c0, %c0_0] : memref<8x128xf32, #tpu.memory_space<vmem>>, vector<8x128xf32>
    %c0_1 = arith.constant 0 : index
    %c0_2 = arith.constant 0 : index
    %1 = vector.load %arg2[%c0_1, %c0_2] : memref<128x64xf32, #tpu.memory_space<vmem>>, vector<128x64xf32>
    %cst = arith.constant dense<0.000000e+00> : vector<8x64xf32>
    %2 = tpu.matmul %0, %1, %cst {dimension_numbers = #tpu.dot_dimension_numbers<[1], [0], [0], [1], [0, 0, 1, 1], [], []>} : vector<8x128xf32>, vector<128x64xf32>, vector<8x64xf32> -> vector<8x64xf32>
    %c0_3 = arith.constant 0 : index
    %c0_4 = arith.constant 0 : index
    %3 = vector.load %arg3[%c0_3, %c0_4] : memref<1x64xf32, #tpu.memory_space<vmem>>, vector<1x64xf32>
    %4 = vector.broadcast %3 : vector<1x64xf32> to vector<8x64xf32>
    %5 = arith.addf %2, %4 : vector<8x64xf32>
    %cst_5 = arith.constant 0.000000e+00 : f32
    %6 = vector.broadcast %cst_5 : f32 to vector<8x64xf32>
    %7 = arith.maximumf %5, %6 : vector<8x64xf32>
    %c0_6 = arith.constant 0 : index
    %c0_7 = arith.constant 0 : index
    %8 = vector.load %arg4[%c0_6, %c0_7] : memref<64x4xf32, #tpu.memory_space<vmem>>, vector<64x4xf32>
    %cst_8 = arith.constant dense<0.000000e+00> : vector<8x4xf32>
    %9 = tpu.matmul %7, %8, %cst_8 {dimension_numbers = #tpu.dot_dimension_numbers<[1], [0], [0], [1], [0, 0, 1, 1], [], []>} : vector<8x64xf32>, vector<64x4xf32>, vector<8x4xf32> -> vector<8x4xf32>
    %c0_9 = arith.constant 0 : index
    %10 = memref.load %arg5[%c0_9] : memref<1xf32, #tpu.memory_space<smem>>
    %11 = vector.broadcast %10 : f32 to vector<8x4xf32>
    %12 = arith.addf %9, %11 : vector<8x4xf32>
    %c0_10 = arith.constant 0 : index
    %c0_11 = arith.constant 0 : index
    %13 = vector.load %arg6[%c0_10, %c0_11] : memref<8x4xf32, #tpu.memory_space<vmem>>, vector<8x4xf32>
    tpu.vector_store %arg6[%c0_10, %c0_11], %12 {strides = array<i32>} : memref<8x4xf32, #tpu.memory_space<vmem>>, vector<8x4xf32>,
    return
  }
  func.func @transform_0(%arg0: i32) -> (i32, i32) {
    %c0_i32 = arith.constant 0 : i32
    %c0_i32_0 = arith.constant 0 : i32
    return %arg0, %c0_i32 : i32, i32
  }
  func.func @transform_1(%arg0: i32) -> (i32, i32) {
    %c0_i32 = arith.constant 0 : i32
    %c0_i32_0 = arith.constant 0 : i32
    %c0_i32_1 = arith.constant 0 : i32
    return %c0_i32, %c0_i32_0 : i32, i32
  }
  func.func @transform_2(%arg0: i32) -> (i32, i32) {
    %c0_i32 = arith.constant 0 : i32
    %c0_i32_0 = arith.constant 0 : i32
    %c0_i32_1 = arith.constant 0 : i32
    return %c0_i32, %c0_i32_0 : i32, i32
  }
  func.func @transform_3(%arg0: i32) -> (i32, i32) {
    %c0_i32 = arith.constant 0 : i32
    %c0_i32_0 = arith.constant 0 : i32
    %c0_i32_1 = arith.constant 0 : i32
    return %c0_i32, %c0_i32_0 : i32, i32
  }
  func.func @transform_4(%arg0: i32) -> i32 {
    %c0_i32 = arith.constant 0 : i32
    %c0_i32_0 = arith.constant 0 : i32
    return %c0_i32 : i32
  }
  func.func @transform_5(%arg0: i32) -> (i32, i32) {
    %c0_i32 = arith.constant 0 : i32
    %c0_i32_0 = arith.constant 0 : i32
    return %arg0, %c0_i32 : i32, i32
  }
}

</mosaic_0001>

<llo_original>
// kernel: tpu_custom_call.1
$region0: #{tpu_custom_call.1}
  #allocation0 [shape = 'u32[]', space=smem, size = 0x4, offset = 0x4, fixed_abs, tag = 'smem constant byte address 0x4 - core index']
  #allocation1 [shape = 'u32[144,128]{1,0:T(1,128)}', space=vmem, size = 0x12000, scoped, tag = 'internal scratch']
  #allocation2 [shape = 'f32[1]{0:T(128)S(6)}', space=smem, size = 0x200, scoped, tag = 'scoped memory for tpu_custom_call.1']
  %s0 = inlined_call_operand.vmem [shape: f32[8,128], index: 0, kind: input, shape index: {}]
  %s1 = inlined_call_operand.vmem [shape: f32[128,64], index: 1, kind: input, shape index: {}]
  %s2 = inlined_call_operand.vmem [shape: f32[1,64], index: 2, kind: input, shape index: {}]
  %s3 = inlined_call_operand.vmem [shape: f32[64,4], index: 3, kind: input, shape index: {}]
  %s4 = inlined_call_operand.<no memory space> [shape: f32[1], index: 4, kind: input, shape index: {}]
  %s5 = inlined_call_operand.vmem [shape: f32[8,4], index: 5, kind: output, shape index: {}]
  %s6 = sld [smem:[#allocation0]]
  $region30: #{tpu_custom_call.1} parent=0
    _
  %s8 = ssub.s32 1, %s6
  %s9 = scalar_select 0, %s8, %s6
  %10 = sst [smem:[#allocation2]] %s4
  // Predicated region
  $region2: #{tpu_custom_call.1} parent=0 // pred_check
    _
  $region3: #{tpu_custom_call.1} parent=0 // pred_check_branch
    %12 = sbr.rel (0) target = $region5
  $region4: #{tpu_custom_call.1} parent=0 // pred_region
    _
  $region5: #{tpu_custom_call.1} parent=0 // pred_fallthru
    _
  // Predicated region
  $region6: #{tpu_custom_call.1} parent=0 // pred_check
    _
  $region7: #{tpu_custom_call.1} parent=0 // pred_check_branch
    %14 = sbr.rel (0) target = $region9
  $region8: #{tpu_custom_call.1} parent=0 // pred_region
    _
  $region9: #{tpu_custom_call.1} parent=0 // pred_fallthru
    _
  // Predicated region
  $region10: #{tpu_custom_call.1} parent=0 // pred_check
    _
  $region11: #{tpu_custom_call.1} parent=0 // pred_check_branch
    %16 = sbr.rel (0) target = $region13
  $region12: #{tpu_custom_call.1} parent=0 // pred_region
    _
  $region13: #{tpu_custom_call.1} parent=0 // pred_fallthru
    _
  // Predicated region
  $region14: #{tpu_custom_call.1} parent=0 // pred_check
    _
  $region15: #{tpu_custom_call.1} parent=0 // pred_check_branch
    %18 = sbr.rel (0) target = $region17
  $region16: #{tpu_custom_call.1} parent=0 // pred_region
    _
  $region17: #{tpu_custom_call.1} parent=0 // pred_fallthru
    _
  // Predicated region
  $region18: #{tpu_custom_call.1} parent=0 // pred_check
    _
  $region19: #{tpu_custom_call.1} parent=0 // pred_check_branch
    %20 = sbr.rel (0) target = $region21
  $region20: #{tpu_custom_call.1} parent=0 // pred_region
    _
  $region21: #{tpu_custom_call.1} parent=0 // pred_fallthru
    _
  %v21 = vld [vmem:[%s0] sm:$0xff]
  %v22 = vld [vmem:[%s1] sm:$0xff]
  %v23 = vld [vmem:[%s1 + $0x8] sm:$0xff]
  %v24 = vld [vmem:[%s1 + $0x10] sm:$0xff]
  %v25 = vld [vmem:[%s1 + $0x18] sm:$0xff]
  %v26 = vld [vmem:[%s1 + $0x20] sm:$0xff]
  %v27 = vld [vmem:[%s1 + $0x28] sm:$0xff]
  %v28 = vld [vmem:[%s1 + $0x30] sm:$0xff]
  %v29 = vld [vmem:[%s1 + $0x38] sm:$0xff]
  %v30 = vld [vmem:[%s1 + $0x40] sm:$0xff]
  %v31 = vld [vmem:[%s1 + $0x48] sm:$0xff]
  %v32 = vld [vmem:[%s1 + $0x50] sm:$0xff]
  %v33 = vld [vmem:[%s1 + $0x58] sm:$0xff]
  %v34 = vld [vmem:[%s1 + $0x60] sm:$0xff]
  %v35 = vld [vmem:[%s1 + $0x68] sm:$0xff]
  %v36 = vld [vmem:[%s1 + $0x70] sm:$0xff]
  %v37 = vld [vmem:[%s1 + $0x78] sm:$0xff]
  %v38 = vld [vmem:[%s2] sm:$0x1]
  %v40 = vlaneseq
  %v41 = vshrl.u32 %v40, 7
  %v42 = vsub.s32 0, %v41
  %v43 = vrot.slane %v38, %v42
  %45 = vmatprep.subr.mxu0 0.0
  %46 = vmatpush1.msra.mxu0 %v22
  %47 = vmatprep.subr.mxu0 0.0
  %48 = vmatpush1.msra.mxu0 %v23
  %49 = vmatprep.subr.mxu0 0.0
  %50 = vmatpush1.msra.mxu0 %v24
  %51 = vmatprep.subr.mxu0 0.0
  %52 = vmatpush1.msra.mxu0 %v25
  %53 = vmatprep.subr.mxu0 0.0
  %54 = vmatpush1.msra.mxu0 %v26
  %55 = vmatprep.subr.mxu0 0.0
  %56 = vmatpush1.msra.mxu0 %v27
  %57 = vmatprep.subr.mxu0 0.0
  %58 = vmatpush1.msra.mxu0 %v28
  %59 = vmatprep.subr.mxu0 0.0
  %60 = vmatpush1.msra.mxu0 %v29
  %61 = vmatprep.subr.mxu0 0.0
  %62 = vmatpush1.msra.mxu0 %v30
  %63 = vmatprep.subr.mxu0 0.0
  %64 = vmatpush1.msra.mxu0 %v31
  %65 = vmatprep.subr.mxu0 0.0
  %66 = vmatpush1.msra.mxu0 %v32
  %67 = vmatprep.subr.mxu0 0.0
  %68 = vmatpush1.msra.mxu0 %v33
  %69 = vmatprep.subr.mxu0 0.0
  %70 = vmatpush1.msra.mxu0 %v34
  %71 = vmatprep.subr.mxu0 0.0
  %72 = vmatpush1.msra.mxu0 %v35
  %73 = vmatprep.subr.mxu0 0.0
  %74 = vmatpush1.msra.mxu0 %v36
  %75 = vmatprep.subr.mxu0 0.0
  %76 = vmatpush1.msra.mxu0 %v37
  %77 = vmatprep.subr.mxu0 0.0
  %78 = vmatpush1.msra.mxu0 0.0
  %79 = vmatprep.subr.mxu0 0.0
  %80 = vmatpush1.msra.mxu0 0.0
  %81 = vmatprep.subr.mxu0 0.0
  %82 = vmatpush1.msra.mxu0 0.0
  %83 = vmatprep.subr.mxu0 0.0
  %84 = vmatpush1.msra.mxu0 0.0
  %85 = vmatprep.subr.mxu0 0.0
  %86 = vmatpush1.msra.mxu0 0.0
  %87 = vmatprep.subr.mxu0 0.0
  %88 = vmatpush1.msra.mxu0 0.0
  %89 = vmatprep.subr.mxu0 0.0
  %90 = vmatpush1.msra.mxu0 0.0
  %91 = vmatprep.subr.mxu0 0.0
  %92 = vmatpush1.msra.mxu0 0.0
  %93 = vmatprep.subr.mxu0 0.0
  %94 = vmatpush1.msra.mxu0 0.0
  %95 = vmatprep.subr.mxu0 0.0
  %96 = vmatpush1.msra.mxu0 0.0
  %97 = vmatprep.subr.mxu0 0.0
  %98 = vmatpush1.msra.mxu0 0.0
  %99 = vmatprep.subr.mxu0 0.0
  %100 = vmatpush1.msra.mxu0 0.0
  %101 = vmatprep.subr.mxu0 0.0
  %102 = vmatpush1.msra.mxu0 0.0
  %103 = vmatprep.subr.mxu0 0.0
  %104 = vmatpush1.msra.mxu0 0.0
  %105 = vmatprep.subr.mxu0 0.0
  %106 = vmatpush1.msra.mxu0 0.0
  %107 = vmatprep.subr.mxu0 0.0
  %108 = vmatpush1.msra.mxu0 0.0
  %109 = vmatprep.mubr.f32.mxu0 0.0
  %110 = vmatmul.mubr.f32.gmra.mrb[0].mxu0 %v21
  %v111 = vpop.f32.mrb[0].mxu0
  %v112 = vadd.f32 %v43, %v111
  %v113 = vpop.f32.mrb[0].mxu0
  %114 = vdwg.mxu0
  %v115 = vmax.f32 %v112, 0.0
  %v116 = vld [vmem:[%s3] sm:$0xff]
  %v117 = vld [vmem:[%s3 + $0x8] sm:$0xff]
  %v118 = vld [vmem:[%s3 + $0x10] sm:$0xff]
  %v119 = vld [vmem:[%s3 + $0x18] sm:$0xff]
  %v120 = vld [vmem:[%s3 + $0x20] sm:$0xff]
  %v121 = vld [vmem:[%s3 + $0x28] sm:$0xff]
  %v122 = vld [vmem:[%s3 + $0x30] sm:$0xff]
  %v123 = vld [vmem:[%s3 + $0x38] sm:$0xff]
  %s124 = sld [smem:[#allocation2]]
  %v125 = vstv %s124
  %vm126 = vcmask 523264
  %v128 = vsel %vm126, %v115, 0
  %130 = vmatprep.subr.mxu0 0.0
  %131 = vmatpush1.msra.mxu0 %v116
  %132 = vmatprep.subr.mxu0 0.0
  %133 = vmatpush1.msra.mxu0 %v117
  %134 = vmatprep.subr.mxu0 0.0
  %135 = vmatpush1.msra.mxu0 %v118
  %136 = vmatprep.subr.mxu0 0.0
  %137 = vmatpush1.msra.mxu0 %v119
  %138 = vmatprep.subr.mxu0 0.0
  %139 = vmatpush1.msra.mxu0 %v120
  %140 = vmatprep.subr.mxu0 0.0
  %141 = vmatpush1.msra.mxu0 %v121
  %142 = vmatprep.subr.mxu0 0.0
  %143 = vmatpush1.msra.mxu0 %v122
  %144 = vmatprep.subr.mxu0 0.0
  %145 = vmatpush1.msra.mxu0 %v123
  %146 = vmatprep.subr.mxu0 0.0
  %147 = vmatpush1.msra.mxu0 0.0
  %148 = vmatprep.subr.mxu0 0.0
  %149 = vmatpush1.msra.mxu0 0.0
  %150 = vmatprep.subr.mxu0 0.0
  %151 = vmatpush1.msra.mxu0 0.0
  %152 = vmatprep.subr.mxu0 0.0
  %153 = vmatpush1.msra.mxu0 0.0
  %154 = vmatprep.subr.mxu0 0.0
  %155 = vmatpush1.msra.mxu0 0.0
  %156 = vmatprep.subr.mxu0 0.0
  %157 = vmatpush1.msra.mxu0 0.0
  %158 = vmatprep.subr.mxu0 0.0
  %159 = vmatpush1.msra.mxu0 0.0
  %160 = vmatprep.subr.mxu0 0.0
  %161 = vmatpush1.msra.mxu0 0.0
  %162 = vmatprep.subr.mxu0 0.0
  %163 = vmatpush1.msra.mxu0 0.0
  %164 = vmatprep.subr.mxu0 0.0
  %165 = vmatpush1.msra.mxu0 0.0
  %166 = vmatprep.subr.mxu0 0.0
  %167 = vmatpush1.msra.mxu0 0.0
  %168 = vmatprep.subr.mxu0 0.0
  %169 = vmatpush1.msra.mxu0 0.0
  %170 = vmatprep.subr.mxu0 0.0
  %171 = vmatpush1.msra.mxu0 0.0
  %172 = vmatprep.subr.mxu0 0.0
  %173 = vmatpush1.msra.mxu0 0.0
  %174 = vmatprep.subr.mxu0 0.0
  %175 = vmatpush1.msra.mxu0 0.0
  %176 = vmatprep.subr.mxu0 0.0
  %177 = vmatpush1.msra.mxu0 0.0
  %178 = vmatprep.subr.mxu0 0.0
  %179 = vmatpush1.msra.mxu0 0.0
  %180 = vmatprep.subr.mxu0 0.0
  %181 = vmatpush1.msra.mxu0 0.0
  %182 = vmatprep.subr.mxu0 0.0
  %183 = vmatpush1.msra.mxu0 0.0
  %184 = vmatprep.subr.mxu0 0.0
  %185 = vmatpush1.msra.mxu0 0.0
  %186 = vmatprep.subr.mxu0 0.0
  %187 = vmatpush1.msra.mxu0 0.0
  %188 = vmatprep.subr.mxu0 0.0
  %189 = vmatpush1.msra.mxu0 0.0
  %190 = vmatprep.subr.mxu0 0.0
  %191 = vmatpush1.msra.mxu0 0.0
  %192 = vmatprep.subr.mxu0 0.0
  %193 = vmatpush1.msra.mxu0 0.0
  %194 = vmatprep.mubr.f32.mxu0 0.0
  %195 = vmatmul.mubr.f32.gmra.mrb[0].mxu0 %v128
  %v196 = vpop.f32.mrb[0].mxu0
  %v197 = vadd.f32 %v125, %v196
  %v198 = vpop.f32.mrb[0].mxu0
  %199 = vdwg.mxu0
  %vm200 = vcmask 31744
  %201 = vst.msk [vmem:[%s5] sm:$0xff] %vm200, %v197
  // Predicated region
  $region22: #{tpu_custom_call.1} parent=0 // pred_check
    _
  $region23: #{tpu_custom_call.1} parent=0 // pred_check_branch
    %203 = sbr.rel (0) target = $region25
  $region24: #{tpu_custom_call.1} parent=0 // pred_region
    _
  $region25: #{tpu_custom_call.1} parent=0 // pred_fallthru
    _
  // Predicated region
  $region26: #{tpu_custom_call.1} parent=0 // pred_check
    _
  $region27: #{tpu_custom_call.1} parent=0 // pred_check_branch
    %205 = sbr.rel (0) target = $region29
  $region28: #{tpu_custom_call.1} parent=0 // pred_region
    _
  $region29: #{tpu_custom_call.1} parent=0 // pred_fallthru
    _

</llo_original>
